<compile_context>
chip_gen: v6e
topology: v6e:2x2x1
jax: 0.10.0
libtpu: 0.0.40
codegen_flags: <defaults>
</compile_context>

<pallas_src>
import jax
import jax.numpy as jnp
from jax.experimental import pallas as pl
from jax.experimental.pallas import tpu as pltpu

_SPIKE_BLOCK_ELEMS = 2048 * 512   # 1M elems  = 4 MiB f32 / block (heaviside: no big temps)
_PRIM_BLOCK_ELEMS = 1024 * 512    # 512K elems = 2 MiB f32 / block (sigmoid: f32 temps need headroom)
_VMEM_LIMIT_BYTES = 32 * 1024 * 1024   # safe on v5e/v6e (128 MiB phys) and v7x (64 MiB phys)


# ----------------------------------------------------------------------------- kernels

def _heaviside_kernel(x_ref, o_ref):
    # heaviside(x) = 1 if x >= 0 else 0 (heaviside(0)=1, snngrow convention)
    o_ref[...] = (x_ref[...] >= 0).astype(o_ref.dtype)


def _sigmoid_primitive_kernel(alpha_ref, x_ref, o_ref):
    # primitive(x, alpha) = sigmoid(alpha*x) = 0.5*tanh(0.5*alpha*x) + 0.5
    # single EUP transcendental (tanh); scalar half_alpha computed on the scalar path.
    x = x_ref[...].astype(jnp.float32)
    half_alpha = 0.5 * alpha_ref[0]
    o_ref[...] = (0.5 * jnp.tanh(half_alpha * x) + 0.5).astype(o_ref.dtype)


# ----------------------------------------------------------------------------- launch helpers

def _choose_cols(total):
    """Widest lane-dense column count (multiple of 128) and the aligned prefix length."""
    for cols in (512, 256, 128):
        if total % cols == 0:
            return cols, total
    return 128, (total // 128) * 128   # ragged: aligned prefix via Pallas, <128-elem tail via XLA


def _choose_tile_rows(rows, cols, max_block_elems):
    """Rows per block: big (amortize ~0.35us/step), multiple of 8, and >=2 blocks when possible
    so dimension_semantics=('parallel',) actually shards across both v7x TensorCores."""
    max_rows = max(8, (max_block_elems // cols) // 8 * 8)
    if rows < 16:
        return rows                     # single block; block_shape == full array dims is allowed
    half = -(-rows // 2)                # cdiv(rows, 2)
    half = ((half + 7) // 8) * 8        # round up to sublane multiple
    return min(max_rows, half)


def _launch_elementwise(kernel, x2d, tile_rows, out_dtype, smem_scalars=()):
    rows, cols = x2d.shape
    grid = (pl.cdiv(rows, tile_rows),)  # last block may be partial; Pallas masks it
    scalar_specs = [pl.BlockSpec(memory_space=pltpu.MemorySpace.SMEM) for _ in smem_scalars]
    return pl.pallas_call(
        kernel,
        out_shape=jax.ShapeDtypeStruct((rows, cols), out_dtype),
        grid_spec=pltpu.PrefetchScalarGridSpec(
            num_scalar_prefetch=0,
            grid=grid,
            in_specs=scalar_specs + [pl.BlockSpec((tile_rows, cols), lambda i: (i, 0))],
            out_specs=pl.BlockSpec((tile_rows, cols), lambda i: (i, 0)),
        ),
        compiler_params=pltpu.CompilerParams(
            dimension_semantics=("parallel",),       # elementwise: shard grid across TCs (v7x)
            vmem_limit_bytes=_VMEM_LIMIT_BYTES,
        ),
    )(*smem_scalars, x2d)


# ----------------------------------------------------------------------------- module

class SurrogateFunctionBase:
    """JAX/Pallas port of snngrow's SurrogateFunctionBase (sigmoid surrogate instantiation)."""

    def __init__(self, alpha, spike_out=False, spiking=True, spike_dtype=None):
        self.alpha = float(alpha)
        self.spike_out = spike_out
        self.spiking = spiking
        # Optional narrowed dtype for the {0,1} spike output (e.g. jnp.bfloat16) to cut the
        # HBM write stream; None keeps the input dtype (PyTorch parity).
        self.spike_dtype = spike_dtype
        # Cache the device-side alpha once (avoids a per-call host->device transfer).
        self._alpha_dev = jnp.asarray([self.alpha], dtype=jnp.float32)

    def set_spiking_mode(self, spiking: bool):
        self.spiking = spiking

    def extra_repr(self):
        return f"alpha={self.alpha}, spiking={self.spiking}"

    # ---- plain-XLA reference math (used only for the tiny ragged tail, <128 elements) ----
    def _tail_math(self, tail, out_dtype):
        if self.spiking:
            return (tail >= 0).astype(out_dtype)
        half_alpha = jnp.float32(0.5 * self.alpha)
        return (0.5 * jnp.tanh(half_alpha * tail.astype(jnp.float32)) + 0.5).astype(out_dtype)

    def _run_slab(self, x2d, out_dtype):
        if self.spiking:
            tile_rows = _choose_tile_rows(x2d.shape[0], x2d.shape[1], _SPIKE_BLOCK_ELEMS)
            return _launch_elementwise(_heaviside_kernel, x2d, tile_rows, out_dtype)
        tile_rows = _choose_tile_rows(x2d.shape[0], x2d.shape[1], _PRIM_BLOCK_ELEMS)
        return _launch_elementwise(_sigmoid_primitive_kernel, x2d, tile_rows, out_dtype,
                                   smem_scalars=(self._alpha_dev,))

    def __call__(self, x):
        orig_shape = x.shape
        out_dtype = x.dtype
        if self.spiking and self.spike_dtype is not None:
            out_dtype = self.spike_dtype

        total = x.size
        flat = x.reshape(-1)                       # contiguous reshape: no data movement
        cols, aligned = _choose_cols(total)

        if aligned == total:
            # zero-copy lane-dense view; no padding, no output slice
            out2d = self._run_slab(flat.reshape(total // cols, cols), out_dtype)
            return out2d.reshape(orig_shape)

        # Ragged flat size (not a multiple of 128): aligned prefix through the kernel,
        # tiny (<128 elem) tail through plain XLA. Avoids the pad+slice full-tensor passes.
        tail = flat[aligned:]
        out_tail = self._tail_math(tail, out_dtype)
        if aligned > 0:
            out_main = self._run_slab(flat[:aligned].reshape(aligned // cols, cols),
                                      out_dtype).reshape(-1)
            out_flat = jnp.concatenate([out_main, out_tail])
        else:
            out_flat = out_tail                    # tensor smaller than one lane row
        return out_flat.reshape(orig_shape)


# ----------------------------------------------------------------------------- self-test

if __name__ == "__main__":
    key = jax.random.PRNGKey(0)

    # small aligned input (2048 elems -> single 4x512 block)
    x = jax.random.normal(key, (2, 4, 16, 16), dtype=jnp.float32)
    mod = SurrogateFunctionBase(alpha=2.0, spike_out=False, spiking=True)

    y_spike = jax.block_until_ready(mod(x))
    ref_spike = (x >= 0).astype(x.dtype)
    assert y_spike.shape == x.shape and y_spike.dtype == x.dtype
    assert jnp.array_equal(y_spike, ref_spike), "heaviside mismatch"

    mod.set_spiking_mode(False)
    y_prim = jax.block_until_ready(mod(x))
    ref_prim = jax.nn.sigmoid(mod.alpha * x)
    assert jnp.allclose(y_prim, ref_prim, atol=1e-5, rtol=1e-5), "primitive mismatch"

    # medium aligned input (32768 elems -> 64x512 slab, grid of 2 parallel blocks)
    x_med = jax.random.normal(jax.random.PRNGKey(2), (2, 4, 64, 64), dtype=jnp.float32)
    mod.set_spiking_mode(True)
    y_med = jax.block_until_ready(mod(x_med))
    assert jnp.array_equal(y_med, (x_med >= 0).astype(x_med.dtype)), "multi-block heaviside mismatch"
    mod.set_spiking_mode(False)
    y_med_p = jax.block_until_ready(mod(x_med))
    assert jnp.allclose(y_med_p, jax.nn.sigmoid(mod.alpha * x_med),
                        atol=1e-5, rtol=1e-5), "multi-block primitive mismatch"

    # ragged flat size (294 elems): aligned prefix via Pallas + tiny XLA tail, no pad/slice
    x_odd = jax.random.normal(jax.random.PRNGKey(1), (2, 3, 7, 7), dtype=jnp.float32)
    mod.set_spiking_mode(True)
    y_odd = jax.block_until_ready(mod(x_odd))
    assert y_odd.shape == x_odd.shape
    assert jnp.array_equal(y_odd, (x_odd >= 0).astype(x_odd.dtype)), "ragged heaviside mismatch"
    mod.set_spiking_mode(False)
    y_odd_p = jax.block_until_ready(mod(x_odd))
    assert jnp.allclose(y_odd_p, jax.nn.sigmoid(mod.alpha * x_odd),
                        atol=1e-5, rtol=1e-5), "ragged primitive mismatch"

    print("KERNEL_OK")
</pallas_src>

<mosaic_0001>
module attributes {stable_mosaic.version = 11 : i64} {
  func.func @_heaviside_kernel(%arg0: i32, %arg1: memref<4x512xf32, #tpu.memory_space<vmem>>, %arg2: memref<4x512xf32, #tpu.memory_space<vmem>>) attributes {dimension_semantics = [#tpu.dimension_semantics<parallel>], iteration_bounds = array<i64: 1>, scalar_prefetch = 0 : i64, scratch_operands = 0 : i64, tpu.core_type = #tpu.core_type<tc>, window_params = [{transform_indices = @transform_0, window_bounds = array<i64: 4, 512>}, {transform_indices = @transform_1, window_bounds = array<i64: 4, 512>}]} {
    %c0 = arith.constant 0 : index
    %c0_0 = arith.constant 0 : index
    %0 = vector.load %arg1[%c0, %c0_0] : memref<4x512xf32, #tpu.memory_space<vmem>>, vector<4x512xf32>
    %cst = arith.constant 0.000000e+00 : f32
    %1 = vector.broadcast %cst : f32 to vector<4x512xf32>
    %2 = arith.cmpf oge, %0, %1 : vector<4x512xf32>
    %3 = arith.extui %2 : vector<4x512xi1> to vector<4x512xi32>
    %4 = arith.sitofp %3 : vector<4x512xi32> to vector<4x512xf32>
    %c0_1 = arith.constant 0 : index
    %c0_2 = arith.constant 0 : index
    %5 = vector.load %arg2[%c0_1, %c0_2] : memref<4x512xf32, #tpu.memory_space<vmem>>, vector<4x512xf32>
    tpu.vector_store %arg2[%c0_1, %c0_2], %4 {strides = array<i32>} : memref<4x512xf32, #tpu.memory_space<vmem>>, vector<4x512xf32>,
    return
  }
  func.func @transform_0(%arg0: i32) -> (i32, i32) {
    %c0_i32 = arith.constant 0 : i32
    %c0_i32_0 = arith.constant 0 : i32
    return %arg0, %c0_i32 : i32, i32
  }
  func.func @transform_1(%arg0: i32) -> (i32, i32) {
    %c0_i32 = arith.constant 0 : i32
    %c0_i32_0 = arith.constant 0 : i32
    return %arg0, %c0_i32 : i32, i32
  }
}

</mosaic_0001>

<llo_original>
// kernel: tpu_custom_call.1
$region0: #{tpu_custom_call.1}
  #allocation0 [shape = 'u32[]', space=smem, size = 0x4, offset = 0x4, fixed_abs, tag = 'smem constant byte address 0x4 - core index']
  #allocation1 [shape = 'u32[144,128]{1,0:T(1,128)}', space=vmem, size = 0x12000, scoped, tag = 'internal scratch']
  %s0 = inlined_call_operand.hbm [shape: f32[4,512], index: 0, kind: input, shape index: {}]
  %s1 = inlined_call_operand.hbm [shape: f32[4,512], index: 1, kind: output, shape index: {}]
  %s2 = sld [smem:[#allocation0]]
  $region18: #{tpu_custom_call.1} parent=0
    _
  %s4 = ssub.s32 1, %s2
  %s5 = scalar_select 0, %s4, %s2
  $region1: #{tpu_custom_call.1} parent=0
    #allocation2 [shape = 'u8[8192]{0}', space=vmem, size = 0x2000, scoped, tag = 'input window, operand 0, single buffered']
    #allocation3 [shape = 's32[1]{0}', space=sflag, size = 0x4, scoped, tag = 'scoped memory for tpu_custom_call.1']
    #allocation4 [shape = 's32[1]{0}', space=sflag, size = 0x4, scoped, tag = 'scoped memory for tpu_custom_call.1']
    #allocation5 [shape = 'u8[8192]{0}', space=vmem, size = 0x2000, scoped, tag = 'output window, operand 0, single buffered']
    %6 = vsyncpa [#allocation3], 0
    %7 = vsyncpa [#allocation4], 0
    // Predicated region
    $region2: #{tpu_custom_call.1} parent=1 // pred_check
      _
    $region3: #{tpu_custom_call.1} parent=1 // pred_check_branch
      %9 = sbr.rel (0) target = $region5
    $region4: #{tpu_custom_call.1} parent=1 // pred_region
      %s11 = ssub.s32 256, 256
      %12 = vsyncadd [#allocation3], %s11
      %s14 = sshll.u32 [#allocation2], 4
      %s15 = int_to_ptr.vmem [resolvable:$true] %s14
      %17 = dma.hbm_to_vmem [thread:$0]  %s0, 256, %s15, [#allocation3]
    $region5: #{tpu_custom_call.1} parent=1 // pred_fallthru
      _
    // Predicated region
    $region6: #{tpu_custom_call.1} parent=1 // pred_check
      _
    $region7: #{tpu_custom_call.1} parent=1 // pred_check_branch
      %19 = sbr.rel (0) target = $region9
    $region8: #{tpu_custom_call.1} parent=1 // pred_region
      %20 = dma.done [#allocation3], 256
    $region9: #{tpu_custom_call.1} parent=1 // pred_fallthru
      _
    %v21 = vld [vmem:[#allocation2] sm:$0xff]
    %v22 = vld [vmem:[#allocation2 + $0x8] sm:$0xff]
    %vm23 = vcmp.ge.f32.partialorder %v21, 0.0
    %vm24 = vcmp.ge.f32.partialorder %v22, 0.0
    %v25 = vsel %vm23, 1, 0
    %v26 = vsel %vm24, 1, 0
    %v27 = vcvt.s32.f32 %v25
    %v28 = vcvt.s32.f32 %v26
    %29 = vst [vmem:[#allocation5] sm:$0xff] %v27
    %30 = vst [vmem:[#allocation5 + $0x8] sm:$0xff] %v28
    // Predicated region
    $region10: #{tpu_custom_call.1} parent=1 // pred_check
      _
    $region11: #{tpu_custom_call.1} parent=1 // pred_check_branch
      %32 = sbr.rel (0) target = $region13
    $region12: #{tpu_custom_call.1} parent=1 // pred_region
      %s34 = ssub.s32 256, 256
      %35 = vsyncadd [#allocation4], %s34
      %s37 = sshll.u32 [#allocation5], 4
      %s38 = int_to_ptr.vmem [resolvable:$true] %s37
      %40 = dma.vmem_to_hbm [thread:$0]  %s38, 256, %s1, [#allocation4]
    $region13: #{tpu_custom_call.1} parent=1 // pred_fallthru
      _
    // Predicated region
    $region14: #{tpu_custom_call.1} parent=1 // pred_check
      _
    $region15: #{tpu_custom_call.1} parent=1 // pred_check_branch
      %42 = sbr.rel (0) target = $region17
    $region16: #{tpu_custom_call.1} parent=1 // pred_region
      %43 = dma.done [#allocation4], 256
    $region17: #{tpu_custom_call.1} parent=1 // pred_fallthru
      _
    %44 = vsyncpa [#allocation3], 1
    %45 = vsyncpa [#allocation4], 1

</llo_original>
